<compile_context>
chip_gen: v5e
topology: v5e:2x2
jax: 0.10.0
libtpu: 0.0.40
codegen_flags: <defaults>
</compile_context>

<pallas_src>
import functools

import jax
import jax.numpy as jnp
from jax import lax
from jax.experimental import pallas as pl
from jax.experimental.pallas import tpu as pltpu


def _round_up(x: int, m: int) -> int:
    return ((x + m - 1) // m) * m


def _pos_enc_kernel(pos_ref, x_ref, emb_ref, o_ref):
    # pos_ref: (TM, 1) int32   positions for this row tile (VMEM)
    # x_ref:   (TM, D)         node-feature tile (VMEM)
    # emb_ref: (P_pad, D)      full (row-padded) embedding table, VMEM-resident
    # o_ref:   (TM, D)         output tile
    tm = x_ref.shape[0]
    p_pad = emb_ref.shape[0]
    # One-hot gather on the (otherwise idle) MXU.  Compare in int32 (v5e has no
    # bf16 VPU), cast once to the table dtype for the matmul.
    onehot = (pos_ref[...] == lax.broadcasted_iota(jnp.int32, (tm, p_pad), 1)
              ).astype(emb_ref.dtype)
    gathered = jnp.dot(onehot, emb_ref[...], preferred_element_type=jnp.float32)
    o_ref[...] = (x_ref[...].astype(jnp.float32) + gathered).astype(o_ref.dtype)


def _compute_positions(batch: jax.Array) -> jax.Array:
    """positions[j] = #{k < j : batch[k] == batch[j]} in O(N log N), no (N,N) blowup."""
    n = batch.shape[0]
    idx = jnp.arange(n, dtype=jnp.int32)
    order = jnp.argsort(batch, stable=True)   # stable -> preserves node order per graph
    sorted_b = batch[order]
    is_start = jnp.concatenate(
        [jnp.ones((1,), dtype=bool), sorted_b[1:] != sorted_b[:-1]])
    group_start = lax.cummax(jnp.where(is_start, idx, 0), axis=0)
    rank_sorted = idx - group_start           # rank within its own graph
    return jnp.zeros((n,), jnp.int32).at[order].set(rank_sorted)


@functools.partial(jax.jit, static_argnames=("block_rows",))
def learnable_positional_encoding(x, emb_table, batch=None, *, block_rows=512):
    """x: (N, D) float, emb_table: (max_nodes, D) float, batch: (N,) int or None."""
    n, d = x.shape
    max_nodes = emb_table.shape[0]

    if batch is None:
        positions = jnp.arange(n, dtype=jnp.int32)          # single graph
    else:
        positions = _compute_positions(batch.astype(jnp.int32))
    # TODO(synk): PyTorch nn.Embedding raises on positions >= max_nodes; we clamp instead.
    positions = jnp.minimum(positions, max_nodes - 1).astype(jnp.int32)
    pos_2d = positions.reshape(n, 1)

    # Pad the table rows to a multiple of 128 so the one-hot matmul is MXU-aligned.
    p_pad = _round_up(max_nodes, 128)
    emb_p = jnp.pad(emb_table, ((0, p_pad - max_nodes), (0, 0)))

    # Row tile: multiple of 8 (f32 sublanes) or equal to N when N < 8; keep >=2 grid
    # steps when N allows so the "parallel" axis can shard across v7x's two cores.
    if n < 8:
        tm = n
    else:
        tm = min(block_rows, (n // 8) * 8)
        if pl.cdiv(n, tm) < 2 and n >= 16:
            tm = max(8, ((n // 2) // 8) * 8)
    grid = (pl.cdiv(n, tm),)

    out = pl.pallas_call(
        _pos_enc_kernel,
        out_shape=jax.ShapeDtypeStruct((n, d), x.dtype),
        grid=grid,
        in_specs=[
            pl.BlockSpec((tm, 1), lambda i: (i, 0)),        # positions tile
            pl.BlockSpec((tm, d), lambda i: (i, 0)),        # x tile
            pl.BlockSpec((p_pad, d), lambda i: (0, 0)),     # emb table (VMEM-resident)
        ],
        out_specs=pl.BlockSpec((tm, d), lambda i: (i, 0)),
        compiler_params=pltpu.CompilerParams(
            dimension_semantics=("parallel",),
        ),
    )(pos_2d, x, emb_p)
    return out


def _reference(x, emb_table, batch):
    """Pure-JAX reference mirroring the PyTorch forward."""
    n = x.shape[0]
    eq = batch[:, None] == batch[None, :]
    prior = jnp.arange(n)[None, :] < jnp.arange(n)[:, None]
    positions = jnp.sum(eq & prior, axis=1)
    return x + emb_table[positions]


if __name__ == "__main__":
    N, DIM, MAX_NODES = 16, 32, 100

    key = jax.random.PRNGKey(0)
    k_emb, k_x, k_x2 = jax.random.split(key, 3)
    emb_table = jax.random.normal(k_emb, (MAX_NODES, DIM), dtype=jnp.float32)
    x = jax.random.normal(k_x, (N, DIM), dtype=jnp.float32)
    # Three graphs of 5, 7, 4 nodes (grouped, like a PyG batch vector).
    batch = jnp.array([0] * 5 + [1] * 7 + [2] * 4, dtype=jnp.int32)

    out = jax.block_until_ready(learnable_positional_encoding(x, emb_table, batch))
    ref = _reference(x, emb_table, batch)
    assert out.shape == (N, DIM) and out.dtype == jnp.float32
    assert jnp.allclose(out, ref, atol=1e-5, rtol=1e-5), "mismatch vs reference"

    # batch=None path (all nodes in one graph -> positions = arange(N)).
    out_none = jax.block_until_ready(learnable_positional_encoding(x, emb_table, None))
    ref_none = _reference(x, emb_table, jnp.zeros((N,), dtype=jnp.int32))
    assert jnp.allclose(out_none, ref_none, atol=1e-5, rtol=1e-5)

    # Ungrouped (interleaved) batch + ragged N: exercises the ragged last grid block
    # (no wrapper-side padding of x) and a multi-step grid.
    N2 = 27
    x2 = jax.random.normal(k_x2, (N2, DIM), dtype=jnp.float32)
    batch2 = jnp.array([i % 3 for i in range(N2)], dtype=jnp.int32)
    out2 = jax.block_until_ready(
        learnable_positional_encoding(x2, emb_table, batch2, block_rows=8))
    ref2 = _reference(x2, emb_table, batch2)
    assert out2.shape == (N2, DIM)
    assert jnp.allclose(out2, ref2, atol=1e-5, rtol=1e-5)

    print("KERNEL_OK")
</pallas_src>

<mosaic_0001>
module attributes {stable_mosaic.version = 11 : i64} {
  func.func @_pos_enc_kernel(%arg0: i32, %arg1: memref<8x1xi32, #tpu.memory_space<vmem>>, %arg2: memref<8x32xf32, #tpu.memory_space<vmem>>, %arg3: memref<128x32xf32, #tpu.memory_space<vmem>>, %arg4: memref<8x32xf32, #tpu.memory_space<vmem>>) attributes {dimension_semantics = [#tpu.dimension_semantics<parallel>], iteration_bounds = array<i64: 2>, scalar_prefetch = 0 : i64, scratch_operands = 0 : i64, tpu.core_type = #tpu.core_type<tc>, window_params = [{transform_indices = @transform_0, window_bounds = array<i64: 8, 1>}, {transform_indices = @transform_1, window_bounds = array<i64: 8, 32>}, {pipeline_mode = #tpu.pipeline_mode<synchronous>, transform_indices = @transform_2, window_bounds = array<i64: 128, 32>}, {transform_indices = @transform_3, window_bounds = array<i64: 8, 32>}]} {
    %c0 = arith.constant 0 : index
    %c0_0 = arith.constant 0 : index
    %0 = vector.load %arg1[%c0, %c0_0] : memref<8x1xi32, #tpu.memory_space<vmem>>, vector<8x1xi32>
    %1 = tpu.iota {dimensions = array<i32: 1>} : vector<8x128xi32>
    %2 = vector.broadcast %0 : vector<8x1xi32> to vector<8x128xi32>
    %3 = arith.cmpi eq, %2, %1 : vector<8x128xi32>
    %4 = arith.extui %3 : vector<8x128xi1> to vector<8x128xi32>
    %5 = arith.sitofp %4 : vector<8x128xi32> to vector<8x128xf32>
    %c0_1 = arith.constant 0 : index
    %c0_2 = arith.constant 0 : index
    %6 = vector.load %arg3[%c0_1, %c0_2] : memref<128x32xf32, #tpu.memory_space<vmem>>, vector<128x32xf32>
    %cst = arith.constant dense<0.000000e+00> : vector<8x32xf32>
    %7 = tpu.matmul %5, %6, %cst {dimension_numbers = #tpu.dot_dimension_numbers<[1], [0], [0], [1], [0, 0, 1, 1], [], []>} : vector<8x128xf32>, vector<128x32xf32>, vector<8x32xf32> -> vector<8x32xf32>
    %c0_3 = arith.constant 0 : index
    %c0_4 = arith.constant 0 : index
    %8 = vector.load %arg2[%c0_3, %c0_4] : memref<8x32xf32, #tpu.memory_space<vmem>>, vector<8x32xf32>
    %9 = arith.addf %8, %7 : vector<8x32xf32>
    %c0_5 = arith.constant 0 : index
    %c0_6 = arith.constant 0 : index
    %10 = vector.load %arg4[%c0_5, %c0_6] : memref<8x32xf32, #tpu.memory_space<vmem>>, vector<8x32xf32>
    tpu.vector_store %arg4[%c0_5, %c0_6], %9 {strides = array<i32>} : memref<8x32xf32, #tpu.memory_space<vmem>>, vector<8x32xf32>,
    return
  }
  func.func @transform_0(%arg0: i32) -> (i32, i32) {
    %c0_i32 = arith.constant 0 : i32
    %c0_i32_0 = arith.constant 0 : i32
    return %arg0, %c0_i32 : i32, i32
  }
  func.func @transform_1(%arg0: i32) -> (i32, i32) {
    %c0_i32 = arith.constant 0 : i32
    %c0_i32_0 = arith.constant 0 : i32
    return %arg0, %c0_i32 : i32, i32
  }
  func.func @transform_2(%arg0: i32) -> (i32, i32) {
    %c0_i32 = arith.constant 0 : i32
    %c0_i32_0 = arith.constant 0 : i32
    %c0_i32_1 = arith.constant 0 : i32
    return %c0_i32, %c0_i32_0 : i32, i32
  }
  func.func @transform_3(%arg0: i32) -> (i32, i32) {
    %c0_i32 = arith.constant 0 : i32
    %c0_i32_0 = arith.constant 0 : i32
    return %arg0, %c0_i32 : i32, i32
  }
}

</mosaic_0001>

<llo_original>
// kernel: learnable_positional_encoding.1
$region0: #{learnable_positional_encoding.1}
  #allocation0 [shape = 'u32[]', space=smem, size = 0x4, offset = 0x4, fixed_abs, tag = 'smem constant byte address 0x4 - core index']
  #allocation1 [shape = 'u32[72,128]{1,0:T(1,128)}', space=vmem, size = 0x9000, scoped, tag = 'internal scratch']
  %s0 = inlined_call_operand.vmem [shape: s32[16,1], index: 0, kind: input, shape index: {}]
  %s1 = inlined_call_operand.vmem [shape: f32[16,32], index: 1, kind: input, shape index: {}]
  %s2 = inlined_call_operand.vmem [shape: f32[128,32], index: 2, kind: input, shape index: {}]
  %s3 = inlined_call_operand.hbm [shape: f32[16,32], index: 3, kind: output, shape index: {}]
  %s4 = sld [smem:[#allocation0]]
  $region45: #{learnable_positional_encoding.1} parent=0
    _
  %s6 = ssub.s32 1, %s4
  %s7 = scalar_select 0, %s6, %s4
  $region1: #{learnable_positional_encoding.1} parent=0
    #allocation2 [shape = 'u8[8192]{0}', space=vmem, size = 0x2000, scoped, tag = 'output window, operand 0']
    #allocation3 [shape = 's32[2]{0}', space=sflag, size = 0x8, scoped, tag = 'scoped memory for learnable_positional_encoding.1']
    %8 = vsyncpa [#allocation3], 0
    %s9 = scalar_lea.sflag [#allocation3], 1
    %10 = vsyncpa %s9, 0
    loop: start=0, step=1, limit=4
    $region2: #{learnable_positional_encoding.1} parent=1 // loop_pre_header
      _
    $region3: #{learnable_positional_encoding.1} parent=1 // loop_header
      %s12 = sphi 0, %s16
      %p13 = scmp.ge.s32.totalorder %s12, 4
      %s22 = sphi 0, %s24
      %s25 = sphi 0, %s22
      %s26 = sphi 0, %s25
      %s42 = sphi 0, %s26
      %s48 = sphi 0, %s50
      %s51 = sphi 0, %s48
      %s52 = sphi 0, %s51
      %s68 = sphi 0, %s52
      %s72 = sphi 0, %s72
      %s74 = sphi 0, %s72
      %s75 = sphi 0, %s74
      %s89 = sphi 0, %s75
      %s95 = sphi 0, %s97
      %s98 = sphi 0, %s95
      %s99 = sphi 0, %s98
      %s115 = sphi 0, %s99
    $region4: #{learnable_positional_encoding.1} parent=1 // loop_header_branch
      %15 = sbr.rel (%p13) target = $region8
    $region5: #{learnable_positional_encoding.1} parent=1 // loop_body
      %s17 = ssub.s32 %s12, 1
      %s18 = ssub.s32 %s12, 2
      %s19 = sadd.s32 %s12, 1
      %s20 = ssub.s32 %s12, %s19
      %p21 = scmp.eq.s32.totalorder %s20, 0
      %s23 = sadd.s32 %s22, 1
      %s24 = scalar_select %p21, %s22, %s23
      %p27 = pneg %p21
      %p28 = scmp.eq.s32.totalorder %s12, 1
      %p29 = por %p27, %p28
      %p30 = scmp.ne.s32.totalorder %s22, %s25
      %p31 = scmp.eq.s32.totalorder %s12, 0
      %p32 = por %p30, %p31
      %p33 = scmp.ne.s32.totalorder %s22, %s25
      %p34 = scmp.eq.s32.totalorder %s17, 1
      %p35 = por %p33, %p34
      %p36 = scmp.ne.s32.totalorder %s25, %s26
      %p37 = scmp.eq.s32.totalorder %s17, 0
      %p38 = por %p36, %p37
      %p39 = scmp.ne.s32.totalorder %s25, %s26
      %p40 = scmp.eq.s32.totalorder %s18, 1
      %p41 = por %p39, %p40
      %p43 = scmp.ne.s32.totalorder %s26, %s42
      %p44 = scmp.eq.s32.totalorder %s18, 0
      %p45 = por %p43, %p44
      %s46 = ssub.s32 %s12, %s19
      %p47 = scmp.eq.s32.totalorder %s46, 0
      %s49 = sadd.s32 %s48, 1
      %s50 = scalar_select %p47, %s48, %s49
      %p53 = pneg %p47
      %p54 = scmp.eq.s32.totalorder %s12, 1
      %p55 = por %p53, %p54
      %p56 = scmp.ne.s32.totalorder %s48, %s51
      %p57 = scmp.eq.s32.totalorder %s12, 0
      %p58 = por %p56, %p57
      %p59 = scmp.ne.s32.totalorder %s48, %s51
      %p60 = scmp.eq.s32.totalorder %s17, 1
      %p61 = por %p59, %p60
      %p62 = scmp.ne.s32.totalorder %s51, %s52
      %p63 = scmp.eq.s32.totalorder %s17, 0
      %p64 = por %p62, %p63
      %p65 = scmp.ne.s32.totalorder %s51, %s52
      %p66 = scmp.eq.s32.totalorder %s18, 1
      %p67 = por %p65, %p66
      %p69 = scmp.ne.s32.totalorder %s52, %s68
      %p70 = scmp.eq.s32.totalorder %s18, 0
      %p71 = por %p69, %p70
      %s73 = sadd.s32 %s72, 1
      %p76 = scmp.eq.s32.totalorder %s12, 1
      %p77 = scmp.ne.s32.totalorder %s72, %s74
      %p78 = scmp.eq.s32.totalorder %s12, 0
      %p79 = por %p77, %p78
      %p80 = scmp.ne.s32.totalorder %s72, %s74
      %p81 = scmp.eq.s32.totalorder %s17, 1
      %p82 = por %p80, %p81
      %p83 = scmp.ne.s32.totalorder %s74, %s75
      %p84 = scmp.eq.s32.totalorder %s17, 0
      %p85 = por %p83, %p84
      %p86 = scmp.ne.s32.totalorder %s74, %s75
      %p87 = scmp.eq.s32.totalorder %s18, 1
      %p88 = por %p86, %p87
      %p90 = scmp.ne.s32.totalorder %s75, %s89
      %p91 = scmp.eq.s32.totalorder %s18, 0
      %p92 = por %p90, %p91
      %s93 = ssub.s32 %s12, %s19
      %p94 = scmp.eq.s32.totalorder %s93, 0
      %s96 = sadd.s32 %s95, 1
      %s97 = scalar_select %p94, %s95, %s96
      %p100 = pneg %p94
      %p101 = scmp.eq.s32.totalorder %s12, 1
      %p102 = por %p100, %p101
      %p103 = scmp.ne.s32.totalorder %s95, %s98
      %p104 = scmp.eq.s32.totalorder %s12, 0
      %p105 = por %p103, %p104
      %p106 = scmp.ne.s32.totalorder %s95, %s98
      %p107 = scmp.eq.s32.totalorder %s17, 1
      %p108 = por %p106, %p107
      %p109 = scmp.ne.s32.totalorder %s98, %s99
      %p110 = scmp.eq.s32.totalorder %s17, 0
      %p111 = por %p109, %p110
      %p112 = scmp.ne.s32.totalorder %s98, %s99
      %p113 = scmp.eq.s32.totalorder %s18, 1
      %p114 = por %p112, %p113
      %p116 = scmp.ne.s32.totalorder %s99, %s115
      %p117 = scmp.eq.s32.totalorder %s18, 0
      %p118 = por %p116, %p117
      %p119 = scmp.le.s32.totalorder 1, %s12
      %p120 = scmp.lt.s32.totalorder %s12, 3
      %p121 = pnand %p119, %p120
      %p122 = pneg %p121
      // Predicated region
      $region9: #{learnable_positional_encoding.1} parent=5 // pred_check
        _
      $region10: #{learnable_positional_encoding.1} parent=5 // pred_check_branch
        %124 = sbr.rel (%p121) target = $region12
      $region11: #{learnable_positional_encoding.1} parent=5 // pred_region
        %s125 = ssub.s32 %s12, 1
        // Predicated region
        $region13: #{learnable_positional_encoding.1} parent=11 // pred_check
          %p126 = pneg %p85
        $region14: #{learnable_positional_encoding.1} parent=11 // pred_check_branch
          %128 = sbr.rel (%p126) target = $region16
        $region15: #{learnable_positional_encoding.1} parent=11 // pred_region
          _
        $region16: #{learnable_positional_encoding.1} parent=11 // pred_fallthru
          _
      $region12: #{learnable_positional_encoding.1} parent=5 // pred_fallthru
        _
      %p129 = scmp.lt.s32.totalorder %s12, 2
      // Predicated region
      $region17: #{learnable_positional_encoding.1} parent=5 // pred_check
        %p130 = pneg %p129
      $region18: #{learnable_positional_encoding.1} parent=5 // pred_check_branch
        %132 = sbr.rel (%p130) target = $region20
      $region19: #{learnable_positional_encoding.1} parent=5 // pred_region
        // Predicated region
        $region21: #{learnable_positional_encoding.1} parent=19 // pred_check
          %p133 = pneg %p32
        $region22: #{learnable_positional_encoding.1} parent=19 // pred_check_branch
          %135 = sbr.rel (%p133) target = $region24
        $region23: #{learnable_positional_encoding.1} parent=19 // pred_region
          %p136 = scmp.lt.s32.totalorder %s12, 1
          %s137 = scalar_select %p136, %s12, 1
          %s138 = smul.addr %s137, 8
          %s139 = scalar_lea.vmem %s0, %s138
        $region24: #{learnable_positional_encoding.1} parent=19 // pred_fallthru
          _
        // Predicated region
        $region25: #{learnable_positional_encoding.1} parent=19 // pred_check
          %p140 = pneg %p58
        $region26: #{learnable_positional_encoding.1} parent=19 // pred_check_branch
          %142 = sbr.rel (%p140) target = $region28
        $region27: #{learnable_positional_encoding.1} parent=19 // pred_region
          %p143 = scmp.lt.s32.totalorder %s12, 1
          %s144 = scalar_select %p143, %s12, 1
          %s145 = smul.addr %s144, 8
          %s146 = scalar_lea.vmem %s1, %s145
        $region28: #{learnable_positional_encoding.1} parent=19 // pred_fallthru
          _
      $region20: #{learnable_positional_encoding.1} parent=5 // pred_fallthru
        _
      %p147 = scmp.le.s32.totalorder 1, %s12
      %p148 = scmp.lt.s32.totalorder %s12, 3
      %p149 = pnand %p147, %p148
      %p150 = pneg %p149
      // Predicated region
      $region29: #{learnable_positional_encoding.1} parent=5 // pred_check
        _
      $region30: #{learnable_positional_encoding.1} parent=5 // pred_check_branch
        %152 = sbr.rel (%p149) target = $region32
      $region31: #{learnable_positional_encoding.1} parent=5 // pred_region
        %s153 = ssub.s32 %s12, 1
        %p154 = scmp.lt.s32.totalorder %s17, 1
        %s155 = scalar_select %p154, %s17, 1
        %s156 = smul.addr %s155, 8
        %s157 = scalar_lea.vmem %s0, %s156
        %p158 = pneg %p38
        %p159 = pneg %p35
        %p160 = scmp.lt.s32.totalorder %s17, 1
        %s161 = scalar_select %p160, %s17, 1
        %s162 = smul.addr %s161, 8
        %s163 = scalar_lea.vmem %s1, %s162
        %p164 = pneg %p64
        %p165 = pneg %p61
        %p166 = pneg %p85
        %p167 = pneg %p82
        %p168 = pneg %p111
        %p169 = pneg %p108
        %s170 = sand.u32 %s98, 1
        %s171 = scalar_lea.sflag [#allocation3], %s170
        %s172 = sand.u32 %s98, 1
        %s173 = smul.addr %s172, 8
        %s174 = scalar_lea.vmem [#allocation2], %s173
        %p175 = scmp.lt.s32.totalorder %s17, 1
        %s176 = scalar_select %p175, %s17, 1
        %s177 = smul.addr %s176, 8
        %s178 = scalar_lea.vmem %s0, %s177
        %p179 = scmp.lt.s32.totalorder %s17, 1
        %s180 = scalar_select %p179, %s17, 1
        %s181 = smul.addr %s180, 8
        %s182 = scalar_lea.vmem %s1, %s181
        %v183 = vld [vmem:[%s178] sm:$0xff]
        %v184 = vlaneseq
        %v185 = vand.u32 %v184, 127
        %186 = vset.pattern.permute.xlu0 0
        %187 = vperm.xlu0 %186, %v183
        %v188 = vpop.permute.xlu0 %187
        %vm189 = vcmp.eq.s32.totalorder %v188, %v185
        %v190 = vsel %vm189, 1, 0
        %v191 = vcvt.s32.f32 %v190
        %v192 = vld [vmem:[%s2] sm:$0xff]
        %v193 = vld [vmem:[%s2 + $0x8] sm:$0xff]
        %v194 = vld [vmem:[%s2 + $0x10] sm:$0xff]
        %v195 = vld [vmem:[%s2 + $0x18] sm:$0xff]
        %v196 = vld [vmem:[%s2 + $0x20] sm:$0xff]
        %v197 = vld [vmem:[%s2 + $0x28] sm:$0xff]
        %v198 = vld [vmem:[%s2 + $0x30] sm:$0xff]
        %v199 = vld [vmem:[%s2 + $0x38] sm:$0xff]
        %v200 = vld [vmem:[%s2 + $0x40] sm:$0xff]
        %v201 = vld [vmem:[%s2 + $0x48] sm:$0xff]
        %v202 = vld [vmem:[%s2 + $0x50] sm:$0xff]
        %v203 = vld [vmem:[%s2 + $0x58] sm:$0xff]
        %v204 = vld [vmem:[%s2 + $0x60] sm:$0xff]
        %v205 = vld [vmem:[%s2 + $0x68] sm:$0xff]
        %v206 = vld [vmem:[%s2 + $0x70] sm:$0xff]
        %v207 = vld [vmem:[%s2 + $0x78] sm:$0xff]
        %208 = vmatpush.msra.mxu0 %v207
        %209 = vmatpush.msra.mxu0 %v206
        %210 = vmatpush.msra.mxu0 %v205
        %211 = vmatpush.msra.mxu0 %v204
        %212 = vmatpush.msra.mxu0 %v203
        %213 = vmatpush.msra.mxu0 %v202
        %214 = vmatpush.msra.mxu0 %v201
        %215 = vmatpush.msra.mxu0 %v200
        %216 = vmatpush.msra.mxu0 %v199
        %217 = vmatpush.msra.mxu0 %v198
        %218 = vmatpush.msra.mxu0 %v197
        %219 = vmatpush.msra.mxu0 %v196
        %220 = vmatpush.msra.mxu0 %v195
        %221 = vmatpush.msra.mxu0 %v194
        %222 = vmatpush.msra.mxu0 %v193
        %223 = vmatpush.msra.mxu0 %v192
        %224 = vmatmul.f32.gmra.mxu0 %v191
        %v225 = vpop.f32.mrf.mxu0
        %v226 = vadd.f32 0.0, %v225
        %227 = vdwg.mxu0
        %v228 = vld [vmem:[%s182] sm:$0xff]
        %v229 = vadd.f32 %v228, %v226
        %vm230 = vcmask 261120
        %231 = vst.msk [vmem:[%s174] sm:$0xff] %vm230, %v229
        %s232 = sand.u32 %s98, 1
        %s233 = scalar_lea.sflag [#allocation3], %s232
        %s234 = sand.u32 %s98, 1
        %s235 = smul.addr %s234, 8
        %s236 = scalar_lea.vmem [#allocation2], %s235
        // Predicated region
        $region33: #{learnable_positional_encoding.1} parent=31 // pred_check
          %p237 = pneg %p108
        $region34: #{learnable_positional_encoding.1} parent=31 // pred_check_branch
          %239 = sbr.rel (%p237) target = $region36
        $region35: #{learnable_positional_encoding.1} parent=31 // pred_region
          %241 = vsyncadd %s233, 0
          %s242 = smul.addr %s17, 8
          %s243 = scalar_lea.hbm %s3, %s242
          %s245 = sshll.u32 %s236, 4
          %s246 = int_to_ptr.vmem [resolvable:$true] %s245
          %s247 = sshll.u32 %s243, 4
          %s248 = int_to_ptr.hbm [resolvable:$true] %s247
          %250 = dma.vmem_to_hbm [thread:$0]  %s246, 128, %s248, %s233
        $region36: #{learnable_positional_encoding.1} parent=31 // pred_fallthru
          _
      $region32: #{learnable_positional_encoding.1} parent=5 // pred_fallthru
        _
      %p251 = scmp.le.s32.totalorder 2, %s12
      // Predicated region
      $region37: #{learnable_positional_encoding.1} parent=5 // pred_check
        %p252 = pneg %p251
      $region38: #{learnable_positional_encoding.1} parent=5 // pred_check_branch
        %254 = sbr.rel (%p252) target = $region40
      $region39: #{learnable_positional_encoding.1} parent=5 // pred_region
        %s255 = ssub.s32 %s12, 2
        // Predicated region
        $region41: #{learnable_positional_encoding.1} parent=39 // pred_check
          %p256 = pneg %p114
        $region42: #{learnable_positional_encoding.1} parent=39 // pred_check_branch
          %258 = sbr.rel (%p256) target = $region44
        $region43: #{learnable_positional_encoding.1} parent=39 // pred_region
          %s259 = sand.u32 %s99, 1
          %s260 = scalar_lea.sflag [#allocation3], %s259
          %s261 = sand.u32 %s99, 1
          %s262 = smul.addr %s261, 8
          %s263 = scalar_lea.vmem [#allocation2], %s262
          %265 = dma.done %s260, 128
        $region44: #{learnable_positional_encoding.1} parent=39 // pred_fallthru
          _
      $region40: #{learnable_positional_encoding.1} parent=5 // pred_fallthru
        _
    $region6: #{learnable_positional_encoding.1} parent=1 // loop_footer
      %s16 = sadd.s32 1, %s12
    $region7: #{learnable_positional_encoding.1} parent=1 // loop_footer_branch
      %11 = sbr.rel target = $region3
    $region8: #{learnable_positional_encoding.1} parent=1 // loop_exit
      _
    %266 = vsyncpa [#allocation3], 1
    %s267 = scalar_lea.sflag [#allocation3], 1
    %268 = vsyncpa %s267, 1

</llo_original>
